<compile_context>
chip_gen: v7x
topology: tpu7x:2x2x1
jax: 0.10.0
libtpu: 0.0.40
codegen_flags: <defaults>
</compile_context>

<pallas_src>
import jax
import jax.numpy as jnp
from jax.experimental import pallas as pl
from jax.experimental.pallas import tpu as pltpu


def _drop_path_kernel(x_ref, m_ref, o_ref):
    # x_ref: (t_s, t_bd); m_ref: (1, t_bd) broadcast over sublanes.
    o_ref[...] = x_ref[...] * m_ref[...]


def _choose_tiles(n_rows: int, n_cols: int, itemsize: int):
    """Pick (t_s, t_bd) honoring the (8, 128) rule with ~1 MiB tiles."""
    # Lane (last-dim) tile: multiple of 128, or the full extent.
    if n_cols % 128 == 0 and n_cols > 2048:
        t_bd = 2048
    else:
        t_bd = n_cols
    # Sublane tile: multiple of 8, or the full extent; ~1 MiB per tile so the
    # double-buffered in+out pipeline stays well inside scoped VMEM on all
    # of v5e / v6e / v7x.
    budget_rows = max(8, (1 << 20) // max(1, t_bd * itemsize))
    if n_rows <= budget_rows:
        t_s = n_rows
    else:
        t_s = max(8, (budget_rows // 8) * 8)
    return t_s, t_bd


def drop_path_pallas(x, key, drop_prob: float = 0.0, training: bool = False,
                     scale_by_keep: bool = True):
    """Exact semantics of bmfm_sm drop_path() for 3-D x of shape (S, B, D)."""
    if drop_prob == 0.0 or not training:
        return x

    S, B, D = x.shape
    keep_prob = 1.0 - drop_prob

    # Plain-JAX glue (tiny, O(B*D)): per-dim-1-sample Bernoulli mask with the
    # 1/keep_prob scale already folded in, expanded to one lane-dense row.
    keep = jax.random.bernoulli(key, p=keep_prob, shape=(B,)).astype(x.dtype)
    scale = (1.0 / keep_prob) if (keep_prob > 0.0 and scale_by_keep) else 1.0
    mask_row = keep * jnp.asarray(scale, dtype=x.dtype)          # (B,)
    mask_row = jnp.repeat(mask_row, D).reshape(1, B * D)         # (1, B*D)

    # Free (row-major contiguous) 2-D view; last dim is the lane axis.
    x2 = x.reshape(S, B * D)

    t_s, t_bd = _choose_tiles(S, B * D, jnp.dtype(x.dtype).itemsize)
    grid = (pl.cdiv(S, t_s), pl.cdiv(B * D, t_bd))

    out2 = pl.pallas_call(
        _drop_path_kernel,
        out_shape=jax.ShapeDtypeStruct((S, B * D), x.dtype),
        grid=grid,
        in_specs=[
            pl.BlockSpec((t_s, t_bd), lambda i, j: (i, j)),
            pl.BlockSpec((1, t_bd), lambda i, j: (0, j)),
        ],
        out_specs=pl.BlockSpec((t_s, t_bd), lambda i, j: (i, j)),
        compiler_params=pltpu.CompilerParams(
            dimension_semantics=("parallel", "parallel")),
    )(x2, mask_row)

    return out2.reshape(S, B, D)


class DropPath:
    """JAX/Pallas equivalent of the PyTorch DropPath module."""

    def __init__(self, drop_prob: float = 0.0, scale_by_keep: bool = True):
        self.drop_prob = drop_prob
        self.scale_by_keep = scale_by_keep
        self.training = True

    def __call__(self, x, key):
        return drop_path_pallas(x, key, self.drop_prob, self.training,
                                self.scale_by_keep)


def _reference(x, key, drop_prob, scale_by_keep=True):
    keep_prob = 1.0 - drop_prob
    keep = jax.random.bernoulli(key, p=keep_prob,
                                shape=(x.shape[1],)).astype(x.dtype)
    scale = (1.0 / keep_prob) if (keep_prob > 0.0 and scale_by_keep) else 1.0
    mask = (keep * jnp.asarray(scale, x.dtype)).reshape(1, x.shape[1], 1)
    return x * mask


if __name__ == "__main__":
    key = jax.random.PRNGKey(0)
    k_x, k_mask, k_x2, k_mask2 = jax.random.split(key, 4)

    # Small shapes implied by the forward: (seq=8, batch=4, hidden=32).
    S, B, D = 8, 4, 32
    x = jax.random.normal(k_x, (S, B, D), dtype=jnp.float32)

    module = DropPath(drop_prob=0.5, scale_by_keep=True)
    module.training = True

    out = jax.block_until_ready(module(x, k_mask))
    ref = _reference(x, k_mask, module.drop_prob)
    assert out.shape == x.shape and out.dtype == x.dtype
    assert jnp.allclose(out, ref, atol=1e-6), "mismatch vs reference (small)"

    # Larger shape to exercise the tiled grid (multiple blocks along S).
    S2, B2, D2 = 1024, 8, 64          # -> 2-D view (1024, 512), grid (2, 1)
    x2 = jax.random.normal(k_x2, (S2, B2, D2), dtype=jnp.float32)
    out2 = jax.block_until_ready(drop_path_pallas(
        x2, k_mask2, drop_prob=0.3, training=True, scale_by_keep=True))
    ref2 = _reference(x2, k_mask2, 0.3)
    assert jnp.allclose(out2, ref2, atol=1e-6), "mismatch vs reference (tiled)"

    # Eval / drop_prob==0 path returns x unchanged (matches PyTorch semantics).
    module.training = False
    out_eval = jax.block_until_ready(module(x, k_mask))
    assert jnp.array_equal(out_eval, x)

    print("KERNEL_OK")
</pallas_src>

<mosaic_0001>
module attributes {stable_mosaic.version = 11 : i64} {
  func.func @_drop_path_kernel(%arg0: i32, %arg1: i32, %arg2: memref<8x128xf32, #tpu.memory_space<vmem>>, %arg3: memref<1x128xf32, #tpu.memory_space<vmem>>, %arg4: memref<8x128xf32, #tpu.memory_space<vmem>>) attributes {dimension_semantics = [#tpu.dimension_semantics<parallel>, #tpu.dimension_semantics<parallel>], iteration_bounds = array<i64: 1, 1>, scalar_prefetch = 0 : i64, scratch_operands = 0 : i64, tpu.core_type = #tpu.core_type<tc>, window_params = [{transform_indices = @transform_0, window_bounds = array<i64: 8, 128>}, {transform_indices = @transform_1, window_bounds = array<i64: 1, 128>}, {transform_indices = @transform_2, window_bounds = array<i64: 8, 128>}]} {
    %c0 = arith.constant 0 : index
    %c0_0 = arith.constant 0 : index
    %0 = vector.load %arg2[%c0, %c0_0] : memref<8x128xf32, #tpu.memory_space<vmem>>, vector<8x128xf32>
    %c0_1 = arith.constant 0 : index
    %c0_2 = arith.constant 0 : index
    %1 = vector.load %arg3[%c0_1, %c0_2] : memref<1x128xf32, #tpu.memory_space<vmem>>, vector<1x128xf32>
    %2 = vector.broadcast %1 : vector<1x128xf32> to vector<8x128xf32>
    %3 = arith.mulf %0, %2 : vector<8x128xf32>
    %c0_3 = arith.constant 0 : index
    %c0_4 = arith.constant 0 : index
    %4 = vector.load %arg4[%c0_3, %c0_4] : memref<8x128xf32, #tpu.memory_space<vmem>>, vector<8x128xf32>
    tpu.vector_store %arg4[%c0_3, %c0_4], %3 {strides = array<i32>} : memref<8x128xf32, #tpu.memory_space<vmem>>, vector<8x128xf32>,
    return
  }
  func.func @transform_0(%arg0: i32, %arg1: i32) -> (i32, i32) {
    %c0_i32 = arith.constant 0 : i32
    return %arg0, %arg1 : i32, i32
  }
  func.func @transform_1(%arg0: i32, %arg1: i32) -> (i32, i32) {
    %c0_i32 = arith.constant 0 : i32
    %c0_i32_0 = arith.constant 0 : i32
    return %c0_i32, %arg1 : i32, i32
  }
  func.func @transform_2(%arg0: i32, %arg1: i32) -> (i32, i32) {
    %c0_i32 = arith.constant 0 : i32
    return %arg0, %arg1 : i32, i32
  }
}

</mosaic_0001>

<llo_original>
// kernel: tpu_custom_call.1
$region0: #{tpu_custom_call.1}
  #allocation0 [shape = 'u32[]', space=smem, size = 0x4, offset = 0x4, fixed_abs, tag = 'smem constant byte address 0x4 - core index']
  #allocation1 [shape = 'u32[144,128]{1,0:T(1,128)}', space=vmem, size = 0x12000, scoped, tag = 'internal scratch']
  %s0 = inlined_call_operand.hbm [shape: f32[8,128], index: 0, kind: input, shape index: {}]
  %s1 = inlined_call_operand.vmem [shape: f32[1,128], index: 1, kind: input, shape index: {}]
  %s2 = inlined_call_operand.hbm [shape: f32[8,128], index: 2, kind: output, shape index: {}]
  %s3 = sld [smem:[#allocation0]]
  $region22: #{tpu_custom_call.1} parent=0
    _
  %s5 = ssub.s32 1, %s3
  %s6 = scalar_select 0, %s5, %s3
  $region1: #{tpu_custom_call.1} parent=0
    #allocation2 [shape = 'u8[4096]{0}', space=vmem, size = 0x1000, scoped, tag = 'input window, operand 0, single buffered']
    #allocation3 [shape = 's32[1]{0}', space=sflag, size = 0x4, scoped, tag = 'scoped memory for tpu_custom_call.1']
    #allocation4 [shape = 's32[1]{0}', space=sflag, size = 0x4, scoped, tag = 'scoped memory for tpu_custom_call.1']
    #allocation5 [shape = 'u8[4096]{0}', space=vmem, size = 0x1000, scoped, tag = 'output window, operand 0, single buffered']
    %7 = vsyncpa [#allocation3], 0
    %8 = vsyncpa [#allocation4], 0
    // Predicated region
    $region2: #{tpu_custom_call.1} parent=1 // pred_check
      _
    $region3: #{tpu_custom_call.1} parent=1 // pred_check_branch
      %10 = sbr.rel (0) target = $region5
    $region4: #{tpu_custom_call.1} parent=1 // pred_region
      %s12 = ssub.s32 128, 128
      %13 = vsyncadd [#allocation3], %s12
      %s15 = sshll.u32 [#allocation2], 4
      %s16 = int_to_ptr.vmem [resolvable:$true] %s15
      %18 = dma.hbm_to_vmem [thread:$0]  %s0, 128, %s16, [#allocation3]
    $region5: #{tpu_custom_call.1} parent=1 // pred_fallthru
      _
    // Predicated region
    $region6: #{tpu_custom_call.1} parent=1 // pred_check
      _
    $region7: #{tpu_custom_call.1} parent=1 // pred_check_branch
      %20 = sbr.rel (0) target = $region9
    $region8: #{tpu_custom_call.1} parent=1 // pred_region
      _
    $region9: #{tpu_custom_call.1} parent=1 // pred_fallthru
      _
    // Predicated region
    $region10: #{tpu_custom_call.1} parent=1 // pred_check
      _
    $region11: #{tpu_custom_call.1} parent=1 // pred_check_branch
      %22 = sbr.rel (0) target = $region13
    $region12: #{tpu_custom_call.1} parent=1 // pred_region
      %23 = dma.done [#allocation3], 128
    $region13: #{tpu_custom_call.1} parent=1 // pred_fallthru
      _
    %v24 = vld [vmem:[#allocation2] sm:$0xff]
    %v25 = vld [vmem:[%s1] sm:$0x1]
    %v27 = vlaneseq
    %v28 = vshrl.u32 %v27, 7
    %v29 = vsub.s32 0, %v28
    %v30 = vrot.slane %v25, %v29
    %v32 = vmul.f32 %v24, %v30
    %33 = vst [vmem:[#allocation5] sm:$0xff] %v32
    // Predicated region
    $region14: #{tpu_custom_call.1} parent=1 // pred_check
      _
    $region15: #{tpu_custom_call.1} parent=1 // pred_check_branch
      %35 = sbr.rel (0) target = $region17
    $region16: #{tpu_custom_call.1} parent=1 // pred_region
      %s37 = ssub.s32 128, 128
      %38 = vsyncadd [#allocation4], %s37
      %s40 = sshll.u32 [#allocation5], 4
      %s41 = int_to_ptr.vmem [resolvable:$true] %s40
      %43 = dma.vmem_to_hbm [thread:$0]  %s41, 128, %s2, [#allocation4]
    $region17: #{tpu_custom_call.1} parent=1 // pred_fallthru
      _
    // Predicated region
    $region18: #{tpu_custom_call.1} parent=1 // pred_check
      _
    $region19: #{tpu_custom_call.1} parent=1 // pred_check_branch
      %45 = sbr.rel (0) target = $region21
    $region20: #{tpu_custom_call.1} parent=1 // pred_region
      %46 = dma.done [#allocation4], 128
    $region21: #{tpu_custom_call.1} parent=1 // pred_fallthru
      _
    %47 = vsyncpa [#allocation3], 1
    %48 = vsyncpa [#allocation4], 1

</llo_original>
